<compile_context>
chip_gen: v6e
topology: v6e:2x2x1
jax: 0.10.0
libtpu: 0.0.40
codegen_flags: <defaults>
</compile_context>

<pallas_src>
import jax
import jax.numpy as jnp
from jax import lax
from jax.experimental import pallas as pl
from jax.experimental.pallas import tpu as pltpu


# ----------------------------------------------------------------------------
# Fused Pallas kernel: embedding gather + n_layers LSTM cells + fc_out
# ----------------------------------------------------------------------------
def _make_fused_kernel(n_layers, hidden_dim):
    H = hidden_dim

    def kernel(*refs):
        # inputs : tok(B,1) emb(V,E) h0(L,B,H) c0(L,B,H)
        #          [w_cat_l(inD+H,4H), b_cat_l(1,4H)] * L, fc_w_t(H,V), fc_b(1,V)
        # outputs: pred(B,V), h_out(L,B,H), c_out(L,B,H)
        n_in = 6 + 2 * n_layers
        tok_ref, emb_ref, h0_ref, c0_ref = refs[0:4]
        layer_refs = refs[4:4 + 2 * n_layers]
        fc_w_ref = refs[4 + 2 * n_layers]
        fc_b_ref = refs[5 + 2 * n_layers]
        pred_ref, h_out_ref, c_out_ref = refs[n_in:n_in + 3]

        # --- embedding lookup as one-hot @ table (MXU gather, table in VMEM) ---
        tok = tok_ref[...]                                    # (B, 1) int32
        B = tok.shape[0]
        V = emb_ref.shape[0]
        vocab_ids = lax.broadcasted_iota(jnp.int32, (B, V), 1)
        onehot = (tok == vocab_ids).astype(jnp.float32)       # (B, V)
        x = jnp.dot(onehot, emb_ref[...],
                    preferred_element_type=jnp.float32)       # (B, E)
        # TODO(synk): nn.Dropout is identity in eval mode; training-mode dropout
        # (pltpu.prng_random_bits masking) not implemented here.

        # --- unrolled LSTM stack; x/h/c live in vregs between layers ---
        for l in range(n_layers):
            w_cat = layer_refs[2 * l][...]                    # (in_dim + H, 4H)
            bias = layer_refs[2 * l + 1][...]                 # (1, 4H)
            h_prev = h0_ref[l]                                # (B, H)
            c_prev = c0_ref[l]                                # (B, H)

            z = jnp.concatenate([x, h_prev], axis=-1)         # (B, in_dim + H)
            gates = jnp.dot(z, w_cat,
                            preferred_element_type=jnp.float32) + bias  # (B, 4H)

            # Two full-vreg nonlinearities, then static 32-lane slices (i,f,g,o).
            sg = jax.nn.sigmoid(gates)
            tg = jnp.tanh(gates)
            i_g = sg[:, 0 * H:1 * H]
            f_g = sg[:, 1 * H:2 * H]
            g_g = tg[:, 2 * H:3 * H]
            o_g = sg[:, 3 * H:4 * H]

            c_new = f_g * c_prev + i_g * g_g
            h_new = o_g * jnp.tanh(c_new)

            h_out_ref[l] = h_new
            c_out_ref[l] = c_new
            x = h_new                                         # input to next layer

        # --- fc_out ---
        pred_ref[...] = (jnp.dot(x, fc_w_ref[...],
                                 preferred_element_type=jnp.float32)
                         + fc_b_ref[...])

    return kernel


def make_byte_decoder_forward(n_layers, batch, emb_dim, hidden_dim, output_dim):
    """Builds the fused forward: (tokens, hidden, cell, fused_params) -> outputs."""
    del emb_dim  # shapes carried by the param arrays themselves
    kernel = _make_fused_kernel(n_layers, hidden_dim)
    vmem = pl.BlockSpec(memory_space=pltpu.MemorySpace.VMEM)
    n_in = 6 + 2 * n_layers

    call = pl.pallas_call(
        kernel,
        out_shape=(
            jax.ShapeDtypeStruct((batch, output_dim), jnp.float32),
            jax.ShapeDtypeStruct((n_layers, batch, hidden_dim), jnp.float32),
            jax.ShapeDtypeStruct((n_layers, batch, hidden_dim), jnp.float32),
        ),
        in_specs=[vmem] * n_in,
        out_specs=(vmem, vmem, vmem),
    )
    # TODO(synk): for autoregressive decode, wrap the whole sequence loop in one
    # pallas_call (lax.fori_loop in-kernel, weights pinned in VMEM) and alias the
    # hidden/cell state via input_output_aliases.

    @jax.jit
    def forward(tokens, hidden, cell, fused):
        tok2 = tokens.reshape(batch, 1).astype(jnp.int32)
        args = [tok2, fused["embedding"], hidden, cell]
        for l in range(n_layers):
            args += [fused["w_cat"][l], fused["b_cat"][l]]
        args += [fused["fc_w_t"], fused["fc_b"]]
        return call(*args)

    return forward


# ----------------------------------------------------------------------------
# Parameters: PyTorch-layout init + one-time fusion into kernel layout
# ----------------------------------------------------------------------------
def init_params(key, output_dim, emb_dim, hidden_dim, n_layers):
    """PyTorch-layout parameters (W_ih:(4H,in), W_hh:(4H,H), fc_w:(V,H))."""
    keys = jax.random.split(key, 4 + n_layers)
    params = {"embedding": 0.1 * jax.random.normal(
        keys[0], (output_dim, emb_dim), jnp.float32)}

    w_ih, w_hh, b_ih, b_hh = [], [], [], []
    for l in range(n_layers):
        in_dim = emb_dim if l == 0 else hidden_dim
        k0, k1, k2, k3 = jax.random.split(keys[1 + l], 4)
        scale = 1.0 / jnp.sqrt(hidden_dim)
        w_ih.append(scale * jax.random.normal(k0, (4 * hidden_dim, in_dim), jnp.float32))
        w_hh.append(scale * jax.random.normal(k1, (4 * hidden_dim, hidden_dim), jnp.float32))
        b_ih.append(scale * jax.random.normal(k2, (4 * hidden_dim,), jnp.float32))
        b_hh.append(scale * jax.random.normal(k3, (4 * hidden_dim,), jnp.float32))
    params.update(w_ih=w_ih, w_hh=w_hh, b_ih=b_ih, b_hh=b_hh)

    params["fc_w"] = 0.1 * jax.random.normal(keys[-2], (output_dim, hidden_dim), jnp.float32)
    params["fc_b"] = 0.1 * jax.random.normal(keys[-1], (output_dim,), jnp.float32)
    return params


def fuse_params(raw, n_layers):
    """One-time (outside the hot path) transpose / concat / bias fusion."""
    fused = {
        "embedding": raw["embedding"],
        "w_cat": [],
        "b_cat": [],
        "fc_w_t": jnp.transpose(raw["fc_w"]),                 # (H, V)
        "fc_b": raw["fc_b"].reshape(1, -1),                   # (1, V)
    }
    for l in range(n_layers):
        w_cat = jnp.concatenate(
            [jnp.transpose(raw["w_ih"][l]), jnp.transpose(raw["w_hh"][l])], axis=0)
        fused["w_cat"].append(w_cat)                          # (in_dim + H, 4H)
        fused["b_cat"].append((raw["b_ih"][l] + raw["b_hh"][l]).reshape(1, -1))
    return fused


# ----------------------------------------------------------------------------
# Pure-JAX reference (PyTorch ByteDecoder semantics, eval mode)
# ----------------------------------------------------------------------------
def byte_decoder_reference(tokens, hidden, cell, raw, n_layers):
    x = raw["embedding"][tokens]                              # (B, E)
    hs, cs = [], []
    for l in range(n_layers):
        gates = (x @ raw["w_ih"][l].T + hidden[l] @ raw["w_hh"][l].T
                 + raw["b_ih"][l] + raw["b_hh"][l])
        i, f, g, o = jnp.split(gates, 4, axis=-1)
        i = jax.nn.sigmoid(i); f = jax.nn.sigmoid(f)
        g = jnp.tanh(g); o = jax.nn.sigmoid(o)
        c = f * cell[l] + i * g
        h = o * jnp.tanh(c)
        hs.append(h); cs.append(c); x = h
    pred = x @ raw["fc_w"].T + raw["fc_b"]
    return pred, jnp.stack(hs, 0), jnp.stack(cs, 0)


# ----------------------------------------------------------------------------
if __name__ == "__main__":
    OUTPUT_DIM = 256   # byte vocabulary
    EMB_DIM = 32
    HIDDEN_DIM = 32
    N_LAYERS = 2
    BATCH = 8

    key = jax.random.PRNGKey(0)
    k_params, k_tok, k_h, k_c = jax.random.split(key, 4)

    raw = init_params(k_params, OUTPUT_DIM, EMB_DIM, HIDDEN_DIM, N_LAYERS)
    fused = fuse_params(raw, N_LAYERS)

    tokens = jax.random.randint(k_tok, (BATCH,), 0, OUTPUT_DIM, jnp.int32)
    hidden = jax.random.normal(k_h, (N_LAYERS, BATCH, HIDDEN_DIM), jnp.float32)
    cell = jax.random.normal(k_c, (N_LAYERS, BATCH, HIDDEN_DIM), jnp.float32)

    forward = make_byte_decoder_forward(N_LAYERS, BATCH, EMB_DIM, HIDDEN_DIM, OUTPUT_DIM)
    prediction, new_hidden, new_cell = forward(tokens, hidden, cell, fused)
    jax.block_until_ready((prediction, new_hidden, new_cell))

    assert prediction.shape == (BATCH, OUTPUT_DIM)
    assert new_hidden.shape == (N_LAYERS, BATCH, HIDDEN_DIM)
    assert new_cell.shape == (N_LAYERS, BATCH, HIDDEN_DIM)

    # Numerical check against the plain-JAX reference.
    ref_pred, ref_h, ref_c = byte_decoder_reference(tokens, hidden, cell, raw, N_LAYERS)
    assert bool(jnp.allclose(prediction, ref_pred, atol=2e-3, rtol=2e-3))
    assert bool(jnp.allclose(new_hidden, ref_h, atol=2e-3, rtol=2e-3))
    assert bool(jnp.allclose(new_cell, ref_c, atol=2e-3, rtol=2e-3))

    print("KERNEL_OK")
</pallas_src>

<mosaic_0001>
module attributes {stable_mosaic.version = 11 : i64} {
  func.func @kernel(%arg0: memref<8x1xi32, #tpu.memory_space<vmem>>, %arg1: memref<256x32xf32, #tpu.memory_space<vmem>>, %arg2: memref<2x8x32xf32, #tpu.memory_space<vmem>>, %arg3: memref<2x8x32xf32, #tpu.memory_space<vmem>>, %arg4: memref<64x128xf32, #tpu.memory_space<vmem>>, %arg5: memref<1x128xf32, #tpu.memory_space<vmem>>, %arg6: memref<64x128xf32, #tpu.memory_space<vmem>>, %arg7: memref<1x128xf32, #tpu.memory_space<vmem>>, %arg8: memref<32x256xf32, #tpu.memory_space<vmem>>, %arg9: memref<1x256xf32, #tpu.memory_space<vmem>>, %arg10: memref<8x256xf32, #tpu.memory_space<vmem>>, %arg11: memref<2x8x32xf32, #tpu.memory_space<vmem>>, %arg12: memref<2x8x32xf32, #tpu.memory_space<vmem>>) attributes {dimension_semantics = [], scalar_prefetch = 0 : i64, scratch_operands = 0 : i64, tpu.core_type = #tpu.core_type<tc>} {
    %c0 = arith.constant 0 : index
    %c0_0 = arith.constant 0 : index
    %0 = vector.load %arg0[%c0, %c0_0] : memref<8x1xi32, #tpu.memory_space<vmem>>, vector<8x1xi32>
    %1 = tpu.iota {dimensions = array<i32: 1>} : vector<8x256xi32>
    %2 = vector.broadcast %0 : vector<8x1xi32> to vector<8x256xi32>
    %3 = arith.cmpi eq, %2, %1 : vector<8x256xi32>
    %4 = arith.extui %3 : vector<8x256xi1> to vector<8x256xi32>
    %5 = arith.sitofp %4 : vector<8x256xi32> to vector<8x256xf32>
    %c0_1 = arith.constant 0 : index
    %c0_2 = arith.constant 0 : index
    %6 = vector.load %arg1[%c0_1, %c0_2] : memref<256x32xf32, #tpu.memory_space<vmem>>, vector<256x32xf32>
    %cst = arith.constant dense<0.000000e+00> : vector<8x32xf32>
    %7 = tpu.matmul %5, %6, %cst {dimension_numbers = #tpu.dot_dimension_numbers<[1], [0], [0], [1], [0, 0, 1, 1], [], []>} : vector<8x256xf32>, vector<256x32xf32>, vector<8x32xf32> -> vector<8x32xf32>
    %c0_3 = arith.constant 0 : index
    %c0_4 = arith.constant 0 : index
    %8 = vector.load %arg4[%c0_3, %c0_4] : memref<64x128xf32, #tpu.memory_space<vmem>>, vector<64x128xf32>
    %c0_5 = arith.constant 0 : index
    %c0_6 = arith.constant 0 : index
    %9 = vector.load %arg5[%c0_5, %c0_6] : memref<1x128xf32, #tpu.memory_space<vmem>>, vector<1x128xf32>
    %c0_7 = arith.constant 0 : index
    %c0_8 = arith.constant 0 : index
    %c0_9 = arith.constant 0 : index
    %10 = vector.load %arg2[%c0_7, %c0_8, %c0_9] : memref<2x8x32xf32, #tpu.memory_space<vmem>>, vector<1x8x32xf32>
    %11 = vector.shape_cast %10 : vector<1x8x32xf32> to vector<8x32xf32>
    %c0_10 = arith.constant 0 : index
    %c0_11 = arith.constant 0 : index
    %c0_12 = arith.constant 0 : index
    %12 = vector.load %arg3[%c0_10, %c0_11, %c0_12] : memref<2x8x32xf32, #tpu.memory_space<vmem>>, vector<1x8x32xf32>
    %13 = vector.shape_cast %12 : vector<1x8x32xf32> to vector<8x32xf32>
    %14 = tpu.concatenate %7, %11 in 1 : vector<8x32xf32>, vector<8x32xf32> -> vector<8x64xf32>
    %cst_13 = arith.constant dense<0.000000e+00> : vector<8x128xf32>
    %15 = tpu.matmul %14, %8, %cst_13 {dimension_numbers = #tpu.dot_dimension_numbers<[1], [0], [0], [1], [0, 0, 1, 1], [], []>} : vector<8x64xf32>, vector<64x128xf32>, vector<8x128xf32> -> vector<8x128xf32>
    %16 = vector.broadcast %9 : vector<1x128xf32> to vector<8x128xf32>
    %17 = arith.addf %15, %16 : vector<8x128xf32>
    %18 = arith.negf %17 : vector<8x128xf32>
    %19 = math.exp %18 : vector<8x128xf32>
    %cst_14 = arith.constant 1.000000e+00 : f32
    %20 = vector.broadcast %cst_14 : f32 to vector<8x128xf32>
    %21 = arith.addf %20, %19 : vector<8x128xf32>
    %22 = arith.divf %20, %21 : vector<8x128xf32>
    %23 = math.tanh %17 : vector<8x128xf32>
    %24 = vector.extract_strided_slice %22 {offsets = [0, 0], sizes = [8, 32], strides = [1, 1]} : vector<8x128xf32> to vector<8x32xf32>
    %25 = vector.extract_strided_slice %22 {offsets = [0, 32], sizes = [8, 32], strides = [1, 1]} : vector<8x128xf32> to vector<8x32xf32>
    %26 = vector.extract_strided_slice %23 {offsets = [0, 64], sizes = [8, 32], strides = [1, 1]} : vector<8x128xf32> to vector<8x32xf32>
    %27 = vector.extract_strided_slice %22 {offsets = [0, 96], sizes = [8, 32], strides = [1, 1]} : vector<8x128xf32> to vector<8x32xf32>
    %28 = arith.mulf %25, %13 : vector<8x32xf32>
    %29 = arith.mulf %24, %26 : vector<8x32xf32>
    %30 = arith.addf %28, %29 : vector<8x32xf32>
    %31 = math.tanh %30 : vector<8x32xf32>
    %32 = arith.mulf %27, %31 : vector<8x32xf32>
    %c0_15 = arith.constant 0 : index
    %c0_16 = arith.constant 0 : index
    %c0_17 = arith.constant 0 : index
    %33 = vector.load %arg11[%c0_15, %c0_16, %c0_17] : memref<2x8x32xf32, #tpu.memory_space<vmem>>, vector<1x8x32xf32>
    %34 = vector.shape_cast %33 : vector<1x8x32xf32> to vector<8x32xf32>
    %35 = vector.shape_cast %32 : vector<8x32xf32> to vector<1x8x32xf32>
    tpu.vector_store %arg11[%c0_15, %c0_16, %c0_17], %35 {strides = array<i32>} : memref<2x8x32xf32, #tpu.memory_space<vmem>>, vector<1x8x32xf32>,
    %c0_18 = arith.constant 0 : index
    %c0_19 = arith.constant 0 : index
    %c0_20 = arith.constant 0 : index
    %36 = vector.load %arg12[%c0_18, %c0_19, %c0_20] : memref<2x8x32xf32, #tpu.memory_space<vmem>>, vector<1x8x32xf32>
    %37 = vector.shape_cast %36 : vector<1x8x32xf32> to vector<8x32xf32>
    %38 = vector.shape_cast %30 : vector<8x32xf32> to vector<1x8x32xf32>
    tpu.vector_store %arg12[%c0_18, %c0_19, %c0_20], %38 {strides = array<i32>} : memref<2x8x32xf32, #tpu.memory_space<vmem>>, vector<1x8x32xf32>,
    %c0_21 = arith.constant 0 : index
    %c0_22 = arith.constant 0 : index
    %39 = vector.load %arg6[%c0_21, %c0_22] : memref<64x128xf32, #tpu.memory_space<vmem>>, vector<64x128xf32>
    %c0_23 = arith.constant 0 : index
    %c0_24 = arith.constant 0 : index
    %40 = vector.load %arg7[%c0_23, %c0_24] : memref<1x128xf32, #tpu.memory_space<vmem>>, vector<1x128xf32>
    %c1 = arith.constant 1 : index
    %c0_25 = arith.constant 0 : index
    %c0_26 = arith.constant 0 : index
    %41 = vector.load %arg2[%c1, %c0_25, %c0_26] : memref<2x8x32xf32, #tpu.memory_space<vmem>>, vector<1x8x32xf32>
    %42 = vector.shape_cast %41 : vector<1x8x32xf32> to vector<8x32xf32>
    %c1_27 = arith.constant 1 : index
    %c0_28 = arith.constant 0 : index
    %c0_29 = arith.constant 0 : index
    %43 = vector.load %arg3[%c1_27, %c0_28, %c0_29] : memref<2x8x32xf32, #tpu.memory_space<vmem>>, vector<1x8x32xf32>
    %44 = vector.shape_cast %43 : vector<1x8x32xf32> to vector<8x32xf32>
    %45 = tpu.concatenate %32, %42 in 1 : vector<8x32xf32>, vector<8x32xf32> -> vector<8x64xf32>
    %cst_30 = arith.constant dense<0.000000e+00> : vector<8x128xf32>
    %46 = tpu.matmul %45, %39, %cst_30 {dimension_numbers = #tpu.dot_dimension_numbers<[1], [0], [0], [1], [0, 0, 1, 1], [], []>} : vector<8x64xf32>, vector<64x128xf32>, vector<8x128xf32> -> vector<8x128xf32>
    %47 = vector.broadcast %40 : vector<1x128xf32> to vector<8x128xf32>
    %48 = arith.addf %46, %47 : vector<8x128xf32>
    %49 = arith.negf %48 : vector<8x128xf32>
    %50 = math.exp %49 : vector<8x128xf32>
    %cst_31 = arith.constant 1.000000e+00 : f32
    %51 = vector.broadcast %cst_31 : f32 to vector<8x128xf32>
    %52 = arith.addf %51, %50 : vector<8x128xf32>
    %53 = arith.divf %51, %52 : vector<8x128xf32>
    %54 = math.tanh %48 : vector<8x128xf32>
    %55 = vector.extract_strided_slice %53 {offsets = [0, 0], sizes = [8, 32], strides = [1, 1]} : vector<8x128xf32> to vector<8x32xf32>
    %56 = vector.extract_strided_slice %53 {offsets = [0, 32], sizes = [8, 32], strides = [1, 1]} : vector<8x128xf32> to vector<8x32xf32>
    %57 = vector.extract_strided_slice %54 {offsets = [0, 64], sizes = [8, 32], strides = [1, 1]} : vector<8x128xf32> to vector<8x32xf32>
    %58 = vector.extract_strided_slice %53 {offsets = [0, 96], sizes = [8, 32], strides = [1, 1]} : vector<8x128xf32> to vector<8x32xf32>
    %59 = arith.mulf %56, %44 : vector<8x32xf32>
    %60 = arith.mulf %55, %57 : vector<8x32xf32>
    %61 = arith.addf %59, %60 : vector<8x32xf32>
    %62 = math.tanh %61 : vector<8x32xf32>
    %63 = arith.mulf %58, %62 : vector<8x32xf32>
    %c1_32 = arith.constant 1 : index
    %c0_33 = arith.constant 0 : index
    %c0_34 = arith.constant 0 : index
    %64 = vector.load %arg11[%c1_32, %c0_33, %c0_34] : memref<2x8x32xf32, #tpu.memory_space<vmem>>, vector<1x8x32xf32>
    %65 = vector.shape_cast %64 : vector<1x8x32xf32> to vector<8x32xf32>
    %66 = vector.shape_cast %63 : vector<8x32xf32> to vector<1x8x32xf32>
    tpu.vector_store %arg11[%c1_32, %c0_33, %c0_34], %66 {strides = array<i32>} : memref<2x8x32xf32, #tpu.memory_space<vmem>>, vector<1x8x32xf32>,
    %c1_35 = arith.constant 1 : index
    %c0_36 = arith.constant 0 : index
    %c0_37 = arith.constant 0 : index
    %67 = vector.load %arg12[%c1_35, %c0_36, %c0_37] : memref<2x8x32xf32, #tpu.memory_space<vmem>>, vector<1x8x32xf32>
    %68 = vector.shape_cast %67 : vector<1x8x32xf32> to vector<8x32xf32>
    %69 = vector.shape_cast %61 : vector<8x32xf32> to vector<1x8x32xf32>
    tpu.vector_store %arg12[%c1_35, %c0_36, %c0_37], %69 {strides = array<i32>} : memref<2x8x32xf32, #tpu.memory_space<vmem>>, vector<1x8x32xf32>,
    %c0_38 = arith.constant 0 : index
    %c0_39 = arith.constant 0 : index
    %70 = vector.load %arg8[%c0_38, %c0_39] : memref<32x256xf32, #tpu.memory_space<vmem>>, vector<32x256xf32>
    %cst_40 = arith.constant dense<0.000000e+00> : vector<8x256xf32>
    %71 = tpu.matmul %63, %70, %cst_40 {dimension_numbers = #tpu.dot_dimension_numbers<[1], [0], [0], [1], [0, 0, 1, 1], [], []>} : vector<8x32xf32>, vector<32x256xf32>, vector<8x256xf32> -> vector<8x256xf32>
    %c0_41 = arith.constant 0 : index
    %c0_42 = arith.constant 0 : index
    %72 = vector.load %arg9[%c0_41, %c0_42] : memref<1x256xf32, #tpu.memory_space<vmem>>, vector<1x256xf32>
    %73 = vector.broadcast %72 : vector<1x256xf32> to vector<8x256xf32>
    %74 = arith.addf %71, %73 : vector<8x256xf32>
    %c0_43 = arith.constant 0 : index
    %c0_44 = arith.constant 0 : index
    %75 = vector.load %arg10[%c0_43, %c0_44] : memref<8x256xf32, #tpu.memory_space<vmem>>, vector<8x256xf32>
    tpu.vector_store %arg10[%c0_43, %c0_44], %74 {strides = array<i32>} : memref<8x256xf32, #tpu.memory_space<vmem>>, vector<8x256xf32>,
    return
  }
}

</mosaic_0001>

<llo_original>
// kernel: forward.1
$region0: #{forward.1}
  #allocation0 [shape = 'u32[]', space=smem, size = 0x4, offset = 0x4, fixed_abs, tag = 'smem constant byte address 0x4 - core index']
  #allocation1 [shape = 'u32[144,128]{1,0:T(1,128)}', space=vmem, size = 0x12000, scoped, tag = 'internal scratch']
  %s0 = inlined_call_operand.vmem [shape: s32[8,1], index: 0, kind: input, shape index: {}]
  %s1 = inlined_call_operand.vmem [shape: f32[256,32], index: 1, kind: input, shape index: {}]
  %s2 = inlined_call_operand.vmem [shape: f32[2,8,32], index: 2, kind: input, shape index: {}]
  %s3 = inlined_call_operand.vmem [shape: f32[2,8,32], index: 3, kind: input, shape index: {}]
  %s4 = inlined_call_operand.vmem [shape: f32[64,128], index: 4, kind: input, shape index: {}]
  %s5 = inlined_call_operand.vmem [shape: f32[1,128], index: 5, kind: input, shape index: {}]
  %s6 = inlined_call_operand.vmem [shape: f32[64,128], index: 6, kind: input, shape index: {}]
  %s7 = inlined_call_operand.vmem [shape: f32[1,128], index: 7, kind: input, shape index: {}]
  %s8 = inlined_call_operand.vmem [shape: f32[32,256], index: 8, kind: input, shape index: {}]
  %s9 = inlined_call_operand.vmem [shape: f32[1,256], index: 9, kind: input, shape index: {}]
  %s10 = inlined_call_operand.hbm [shape: f32[8,256], index: 10, kind: output, shape index: {0}]
  %s11 = inlined_call_operand.hbm [shape: f32[2,8,32], index: 11, kind: output, shape index: {1}]
  %s12 = inlined_call_operand.hbm [shape: f32[2,8,32], index: 12, kind: output, shape index: {2}]
  %13 = xla_tuple %s10, %s11, %s12
  %s14 = sld [smem:[#allocation0]]
  $region66: #{forward.1} parent=0
    _
  %s16 = ssub.s32 1, %s14
  %s17 = scalar_select 0, %s16, %s14
  $region1: #{forward.1} parent=0
    #allocation2 [shape = 'u8[8192]{0}', space=vmem, size = 0x2000, scoped, tag = 'output window, operand 0, single buffered']
    #allocation3 [shape = 's32[1]{0}', space=sflag, size = 0x4, scoped, tag = 'scoped memory for forward.1']
    #allocation4 [shape = 'u8[8192]{0}', space=vmem, size = 0x2000, scoped, tag = 'output window, operand 1, single buffered']
    #allocation5 [shape = 's32[1]{0}', space=sflag, size = 0x4, scoped, tag = 'scoped memory for forward.1']
    #allocation6 [shape = 'u8[8192]{0}', space=vmem, size = 0x2000, scoped, tag = 'output window, operand 2, single buffered']
    %18 = vsyncpa [#allocation3], 0
    %19 = vsyncpa [#allocation5], 0
    // Predicated region
    $region2: #{forward.1} parent=1 // pred_check
      _
    $region3: #{forward.1} parent=1 // pred_check_branch
      %21 = sbr.rel (0) target = $region5
    $region4: #{forward.1} parent=1 // pred_region
      _
    $region5: #{forward.1} parent=1 // pred_fallthru
      _
    // Predicated region
    $region6: #{forward.1} parent=1 // pred_check
      _
    $region7: #{forward.1} parent=1 // pred_check_branch
      %23 = sbr.rel (0) target = $region9
    $region8: #{forward.1} parent=1 // pred_region
      _
    $region9: #{forward.1} parent=1 // pred_fallthru
      _
    // Predicated region
    $region10: #{forward.1} parent=1 // pred_check
      _
    $region11: #{forward.1} parent=1 // pred_check_branch
      %25 = sbr.rel (0) target = $region13
    $region12: #{forward.1} parent=1 // pred_region
      _
    $region13: #{forward.1} parent=1 // pred_fallthru
      _
    // Predicated region
    $region14: #{forward.1} parent=1 // pred_check
      _
    $region15: #{forward.1} parent=1 // pred_check_branch
      %27 = sbr.rel (0) target = $region17
    $region16: #{forward.1} parent=1 // pred_region
      _
    $region17: #{forward.1} parent=1 // pred_fallthru
      _
    // Predicated region
    $region18: #{forward.1} parent=1 // pred_check
      _
    $region19: #{forward.1} parent=1 // pred_check_branch
      %29 = sbr.rel (0) target = $region21
    $region20: #{forward.1} parent=1 // pred_region
      _
    $region21: #{forward.1} parent=1 // pred_fallthru
      _
    // Predicated region
    $region22: #{forward.1} parent=1 // pred_check
      _
    $region23: #{forward.1} parent=1 // pred_check_branch
      %31 = sbr.rel (0) target = $region25
    $region24: #{forward.1} parent=1 // pred_region
      _
    $region25: #{forward.1} parent=1 // pred_fallthru
      _
    // Predicated region
    $region26: #{forward.1} parent=1 // pred_check
      _
    $region27: #{forward.1} parent=1 // pred_check_branch
      %33 = sbr.rel (0) target = $region29
    $region28: #{forward.1} parent=1 // pred_region
      _
    $region29: #{forward.1} parent=1 // pred_fallthru
      _
    // Predicated region
    $region30: #{forward.1} parent=1 // pred_check
      _
    $region31: #{forward.1} parent=1 // pred_check_branch
      %35 = sbr.rel (0) target = $region33
    $region32: #{forward.1} parent=1 // pred_region
      _
    $region33: #{forward.1} parent=1 // pred_fallthru
      _
    // Predicated region
    $region34: #{forward.1} parent=1 // pred_check
      _
    $region35: #{forward.1} parent=1 // pred_check_branch
      %37 = sbr.rel (0) target = $region37
    $region36: #{forward.1} parent=1 // pred_region
      _
    $region37: #{forward.1} parent=1 // pred_fallthru
      _
    // Predicated region
    $region38: #{forward.1} parent=1 // pred_check
      _
    $region39: #{forward.1} parent=1 // pred_check_branch
      %39 = sbr.rel (0) target = $region41
    $region40: #{forward.1} parent=1 // pred_region
      _
    $region41: #{forward.1} parent=1 // pred_fallthru
      _
    %v40 = vld [vmem:[%s0] sm:$0xff]
    %v41 = vlaneseq
    %v42 = vand.u32 %v41, 127
    %v43 = vadd.s32 %v42, 128
    %44 = vset.pattern.permute.xlu0 0
    %45 = vperm.xlu0 %44, %v40
    %v46 = vpop.permute.xlu0 %45
    %vm47 = vcmp.eq.s32.totalorder %v46, %v42
    %vm48 = vcmp.eq.s32.totalorder %v46, %v43
    %v49 = vsel %vm47, 1, 0
    %v50 = vsel %vm48, 1, 0
    %v51 = vcvt.s32.f32 %v49
    %v52 = vcvt.s32.f32 %v50
    %v53 = vld [vmem:[%s1] sm:$0xff]
    %v54 = vld [vmem:[%s1 + $0x8] sm:$0xff]
    %v55 = vld [vmem:[%s1 + $0x10] sm:$0xff]
    %v56 = vld [vmem:[%s1 + $0x18] sm:$0xff]
    %v57 = vld [vmem:[%s1 + $0x20] sm:$0xff]
    %v58 = vld [vmem:[%s1 + $0x28] sm:$0xff]
    %v59 = vld [vmem:[%s1 + $0x30] sm:$0xff]
    %v60 = vld [vmem:[%s1 + $0x38] sm:$0xff]
    %v61 = vld [vmem:[%s1 + $0x40] sm:$0xff]
    %v62 = vld [vmem:[%s1 + $0x48] sm:$0xff]
    %v63 = vld [vmem:[%s1 + $0x50] sm:$0xff]
    %v64 = vld [vmem:[%s1 + $0x58] sm:$0xff]
    %v65 = vld [vmem:[%s1 + $0x60] sm:$0xff]
    %v66 = vld [vmem:[%s1 + $0x68] sm:$0xff]
    %v67 = vld [vmem:[%s1 + $0x70] sm:$0xff]
    %v68 = vld [vmem:[%s1 + $0x78] sm:$0xff]
    %v69 = vld [vmem:[%s1 + $0x80] sm:$0xff]
    %v70 = vld [vmem:[%s1 + $0x88] sm:$0xff]
    %v71 = vld [vmem:[%s1 + $0x90] sm:$0xff]
    %v72 = vld [vmem:[%s1 + $0x98] sm:$0xff]
    %v73 = vld [vmem:[%s1 + $0xa0] sm:$0xff]
    %v74 = vld [vmem:[%s1 + $0xa8] sm:$0xff]
    %v75 = vld [vmem:[%s1 + $0xb0] sm:$0xff]
    %v76 = vld [vmem:[%s1 + $0xb8] sm:$0xff]
    %v77 = vld [vmem:[%s1 + $0xc0] sm:$0xff]
    %v78 = vld [vmem:[%s1 + $0xc8] sm:$0xff]
    %v79 = vld [vmem:[%s1 + $0xd0] sm:$0xff]
    %v80 = vld [vmem:[%s1 + $0xd8] sm:$0xff]
    %v81 = vld [vmem:[%s1 + $0xe0] sm:$0xff]
    %v82 = vld [vmem:[%s1 + $0xe8] sm:$0xff]
    %v83 = vld [vmem:[%s1 + $0xf0] sm:$0xff]
    %v84 = vld [vmem:[%s1 + $0xf8] sm:$0xff]
    %85 = vmatprep.subr.mxu0 0.0
    %86 = vmatpush1.msra.mxu0 %v68
    %87 = vmatprep.subr.mxu0 0.0
    %88 = vmatpush1.msra.mxu0 %v67
    %89 = vmatprep.subr.mxu0 0.0
    %90 = vmatpush1.msra.mxu0 %v66
    %91 = vmatprep.subr.mxu0 0.0
    %92 = vmatpush1.msra.mxu0 %v65
    %93 = vmatprep.subr.mxu0 0.0
    %94 = vmatpush1.msra.mxu0 %v64
    %95 = vmatprep.subr.mxu0 0.0
    %96 = vmatpush1.msra.mxu0 %v63
    %97 = vmatprep.subr.mxu0 0.0
    %98 = vmatpush1.msra.mxu0 %v62
    %99 = vmatprep.subr.mxu0 0.0
    %100 = vmatpush1.msra.mxu0 %v61
    %101 = vmatprep.subr.mxu0 0.0
    %102 = vmatpush1.msra.mxu0 %v60
    %103 = vmatprep.subr.mxu0 0.0
    %104 = vmatpush1.msra.mxu0 %v59
    %105 = vmatprep.subr.mxu0 0.0
    %106 = vmatpush1.msra.mxu0 %v58
    %107 = vmatprep.subr.mxu0 0.0
    %108 = vmatpush1.msra.mxu0 %v57
    %109 = vmatprep.subr.mxu0 0.0
    %110 = vmatpush1.msra.mxu0 %v56
    %111 = vmatprep.subr.mxu0 0.0
    %112 = vmatpush1.msra.mxu0 %v55
    %113 = vmatprep.subr.mxu0 0.0
    %114 = vmatpush1.msra.mxu0 %v54
    %115 = vmatprep.subr.mxu0 0.0
    %116 = vmatpush1.msra.mxu0 %v53
    %117 = vmatprep.subr.mxu0 0.0
    %118 = vmatpush2.msra.mxu0 %v84
    %119 = vmatprep.subr.mxu0 0.0
    %120 = vmatpush2.msra.mxu0 %v83
    %121 = vmatprep.subr.mxu0 0.0
    %122 = vmatpush2.msra.mxu0 %v82
    %123 = vmatprep.subr.mxu0 0.0
    %124 = vmatpush2.msra.mxu0 %v81
    %125 = vmatprep.subr.mxu0 0.0
    %126 = vmatpush2.msra.mxu0 %v80
    %127 = vmatprep.subr.mxu0 0.0
    %128 = vmatpush2.msra.mxu0 %v79
    %129 = vmatprep.subr.mxu0 0.0
    %130 = vmatpush2.msra.mxu0 %v78
    %131 = vmatprep.subr.mxu0 0.0
    %132 = vmatpush2.msra.mxu0 %v77
    %133 = vmatprep.subr.mxu0 0.0
    %134 = vmatpush2.msra.mxu0 %v76
    %135 = vmatprep.subr.mxu0 0.0
    %136 = vmatpush2.msra.mxu0 %v75
    %137 = vmatprep.subr.mxu0 0.0
    %138 = vmatpush2.msra.mxu0 %v74
    %139 = vmatprep.subr.mxu0 0.0
    %140 = vmatpush2.msra.mxu0 %v73
    %141 = vmatprep.subr.mxu0 0.0
    %142 = vmatpush2.msra.mxu0 %v72
    %143 = vmatprep.subr.mxu0 0.0
    %144 = vmatpush2.msra.mxu0 %v71
    %145 = vmatprep.subr.mxu0 0.0
    %146 = vmatpush2.msra.mxu0 %v70
    %147 = vmatprep.subr.mxu0 0.0
    %148 = vmatpush2.msra.mxu0 %v69
    %149 = vmatprep.mubr.f32.mxu0 %v52
    %150 = vmatmul.mubr.f32.gmra.mxu0 %v51
    %v151 = vpop.f32.mrf.mxu0
    %v152 = vadd.f32 0.0, %v151
    %v153 = vpop.f32.mrf.mxu0
    %154 = vdwg.mxu0
    %v155 = vld [vmem:[%s4] sm:$0xff]
    %v156 = vld [vmem:[%s4 + $0x8] sm:$0xff]
    %v157 = vld [vmem:[%s4 + $0x10] sm:$0xff]
    %v158 = vld [vmem:[%s4 + $0x18] sm:$0xff]
    %v159 = vld [vmem:[%s4 + $0x20] sm:$0xff]
    %v160 = vld [vmem:[%s4 + $0x28] sm:$0xff]
    %v161 = vld [vmem:[%s4 + $0x30] sm:$0xff]
    %v162 = vld [vmem:[%s4 + $0x38] sm:$0xff]
    %v163 = vld [vmem:[%s5] sm:$0x1]
    %v164 = vld [vmem:[%s2] sm:$0xff]
    %v165 = vld [vmem:[%s3] sm:$0xff]
    %167 = vrot.lane.b32.xlu0 %v164, 32
    %v168 = vpop.permute.xlu0 %167
    %vm170 = vcmask 261120
    %v171 = vsel %vm170, %v152, %v168
    %v173 = vlaneseq
    %v174 = vshrl.u32 %v173, 7
    %v175 = vsub.s32 0, %v174
    %v176 = vrot.slane %v163, %v175
    %vm178 = vcmask 523264
    %v180 = vsel %vm178, %v171, 0
    %182 = vmatprep.subr.mxu0 0.0
    %183 = vmatpush1.msra.mxu0 0.0
    %184 = vmatprep.subr.mxu0 0.0
    %185 = vmatpush1.msra.mxu0 0.0
    %186 = vmatprep.subr.mxu0 0.0
    %187 = vmatpush1.msra.mxu0 0.0
    %188 = vmatprep.subr.mxu0 0.0
    %189 = vmatpush1.msra.mxu0 0.0
    %190 = vmatprep.subr.mxu0 0.0
    %191 = vmatpush1.msra.mxu0 0.0
    %192 = vmatprep.subr.mxu0 0.0
    %193 = vmatpush1.msra.mxu0 0.0
    %194 = vmatprep.subr.mxu0 0.0
    %195 = vmatpush1.msra.mxu0 0.0
    %196 = vmatprep.subr.mxu0 0.0
    %197 = vmatpush1.msra.mxu0 0.0
    %198 = vmatprep.subr.mxu0 0.0
    %199 = vmatpush1.msra.mxu0 %v162
    %200 = vmatprep.subr.mxu0 0.0
    %201 = vmatpush1.msra.mxu0 %v161
    %202 = vmatprep.subr.mxu0 0.0
    %203 = vmatpush1.msra.mxu0 %v160
    %204 = vmatprep.subr.mxu0 0.0
    %205 = vmatpush1.msra.mxu0 %v159
    %206 = vmatprep.subr.mxu0 0.0
    %207 = vmatpush1.msra.mxu0 %v158
    %208 = vmatprep.subr.mxu0 0.0
    %209 = vmatpush1.msra.mxu0 %v157
    %210 = vmatprep.subr.mxu0 0.0
    %211 = vmatpush1.msra.mxu0 %v156
    %212 = vmatprep.subr.mxu0 0.0
    %213 = vmatpush1.msra.mxu0 %v155
    %214 = vmatprep.subr.mxu0 0.0
    %215 = vmatpush2.msra.mxu0 0.0
    %216 = vmatprep.subr.mxu0 0.0
    %217 = vmatpush2.msra.mxu0 0.0
    %218 = vmatprep.subr.mxu0 0.0
    %219 = vmatpush2.msra.mxu0 0.0
    %220 = vmatprep.subr.mxu0 0.0
    %221 = vmatpush2.msra.mxu0 0.0
    %222 = vmatprep.subr.mxu0 0.0
    %223 = vmatpush2.msra.mxu0 0.0
    %224 = vmatprep.subr.mxu0 0.0
    %225 = vmatpush2.msra.mxu0 0.0
    %226 = vmatprep.subr.mxu0 0.0
    %227 = vmatpush2.msra.mxu0 0.0
    %228 = vmatprep.subr.mxu0 0.0
    %229 = vmatpush2.msra.mxu0 0.0
    %230 = vmatprep.subr.mxu0 0.0
    %231 = vmatpush2.msra.mxu0 0.0
    %232 = vmatprep.subr.mxu0 0.0
    %233 = vmatpush2.msra.mxu0 0.0
    %234 = vmatprep.subr.mxu0 0.0
    %235 = vmatpush2.msra.mxu0 0.0
    %236 = vmatprep.subr.mxu0 0.0
    %237 = vmatpush2.msra.mxu0 0.0
    %238 = vmatprep.subr.mxu0 0.0
    %239 = vmatpush2.msra.mxu0 0.0
    %240 = vmatprep.subr.mxu0 0.0
    %241 = vmatpush2.msra.mxu0 0.0
    %242 = vmatprep.subr.mxu0 0.0
    %243 = vmatpush2.msra.mxu0 0.0
    %244 = vmatprep.subr.mxu0 0.0
    %245 = vmatpush2.msra.mxu0 0.0
    %246 = vmatprep.mubr.f32.mxu0 0.0
    %247 = vmatmul.mubr.f32.gmra.mxu0 %v180
    %v248 = vpop.f32.mrf.mxu0
    %v249 = vadd.f32 %v176, %v248
    %v250 = vpop.f32.mrf.mxu0
    %251 = vdwg.mxu0
    %v252 = vxor.u32 %v249, 2147483648
    %v253 = vmul.f32 %v252, 1.442695
    %v254 = vpow.pop %v253
    %v255 = vadd.f32 %v254, 1.0
    %v256 = vrcp.pop %v255
    %v257 = vmul.f32 1.0, %v256
    %v258 = vtanh.pop %v249
    %260 = vrot.lane.b32.xlu0 %v165, 32
    %v261 = vpop.permute.xlu0 %260
    %v263 = vmul.f32 %v257, %v261
    %265 = vrot.lane.b32.xlu0 %v258, 64
    %v266 = vpop.permute.xlu0 %265
    %v268 = vmul.f32 %v257, %v266
    %270 = vrot.lane.b32.xlu0 %v268, 32
    %v271 = vpop.permute.xlu0 %270
    %v273 = vadd.f32 %v263, %v271
    %v274 = vtanh.pop %v273
    %276 = vrot.lane.b32.xlu0 %v274, 64
    %v277 = vpop.permute.xlu0 %276
    %v279 = vmul.f32 %v257, %v277
    %281 = vrot.lane.b32.xlu0 %v279, 32
    %v282 = vpop.permute.xlu0 %281
    %284 = vst.msk [vmem:[#allocation4] sm:$0xff] %vm170, %v282
    %286 = vrot.lane.b32.xlu0 %v273, 96
    %v287 = vpop.permute.xlu0 %286
    %289 = vst.msk [vmem:[#allocation6] sm:$0xff] %vm170, %v287
    %v290 = vld [vmem:[%s6] sm:$0xff]
    %v291 = vld [vmem:[%s6 + $0x8] sm:$0xff]
    %v292 = vld [vmem:[%s6 + $0x10] sm:$0xff]
    %v293 = vld [vmem:[%s6 + $0x18] sm:$0xff]
    %v294 = vld [vmem:[%s6 + $0x20] sm:$0xff]
    %v295 = vld [vmem:[%s6 + $0x28] sm:$0xff]
    %v296 = vld [vmem:[%s6 + $0x30] sm:$0xff]
    %v297 = vld [vmem:[%s6 + $0x38] sm:$0xff]
    %v298 = vld [vmem:[%s7] sm:$0x1]
    %s299 = scalar_lea.vmem %s2, 8
    %v300 = vld [vmem:[%s299] sm:$0xff]
    %s301 = scalar_lea.vmem %s3, 8
    %v302 = vld [vmem:[%s301] sm:$0xff]
    %304 = vrot.lane.b32.xlu0 %v300, 32
    %v305 = vpop.permute.xlu0 %304
    %v307 = vsel %vm170, %v282, %v305
    %v309 = vlaneseq
    %v310 = vshrl.u32 %v309, 7
    %v311 = vsub.s32 0, %v310
    %v312 = vrot.slane %v298, %v311
    %v315 = vsel %vm178, %v307, 0
    %317 = vmatprep.subr.mxu0 0.0
    %318 = vmatpush1.msra.mxu0 0.0
    %319 = vmatprep.subr.mxu0 0.0
    %320 = vmatpush1.msra.mxu0 0.0
    %321 = vmatprep.subr.mxu0 0.0
    %322 = vmatpush1.msra.mxu0 0.0
    %323 = vmatprep.subr.mxu0 0.0
    %324 = vmatpush1.msra.mxu0 0.0
    %325 = vmatprep.subr.mxu0 0.0
    %326 = vmatpush1.msra.mxu0 0.0
    %327 = vmatprep.subr.mxu0 0.0
    %328 = vmatpush1.msra.mxu0 0.0
    %329 = vmatprep.subr.mxu0 0.0
    %330 = vmatpush1.msra.mxu0 0.0
    %331 = vmatprep.subr.mxu0 0.0
    %332 = vmatpush1.msra.mxu0 0.0
    %333 = vmatprep.subr.mxu0 0.0
    %334 = vmatpush1.msra.mxu0 %v297
    %335 = vmatprep.subr.mxu0 0.0
    %336 = vmatpush1.msra.mxu0 %v296
    %337 = vmatprep.subr.mxu0 0.0
    %338 = vmatpush1.msra.mxu0 %v295
    %339 = vmatprep.subr.mxu0 0.0
    %340 = vmatpush1.msra.mxu0 %v294
    %341 = vmatprep.subr.mxu0 0.0
    %342 = vmatpush1.msra.mxu0 %v293
    %343 = vmatprep.subr.mxu0 0.0
    %344 = vmatpush1.msra.mxu0 %v292
    %345 = vmatprep.subr.mxu0 0.0
    %346 = vmatpush1.msra.mxu0 %v291
    %347 = vmatprep.subr.mxu0 0.0
    %348 = vmatpush1.msra.mxu0 %v290
    %349 = vmatprep.subr.mxu0 0.0
    %350 = vmatpush2.msra.mxu0 0.0
    %351 = vmatprep.subr.mxu0 0.0
    %352 = vmatpush2.msra.mxu0 0.0
    %353 = vmatprep.subr.mxu0 0.0
    %354 = vmatpush2.msra.mxu0 0.0
    %355 = vmatprep.subr.mxu0 0.0
    %356 = vmatpush2.msra.mxu0 0.0
    %357 = vmatprep.subr.mxu0 0.0
    %358 = vmatpush2.msra.mxu0 0.0
    %359 = vmatprep.subr.mxu0 0.0
    %360 = vmatpush2.msra.mxu0 0.0
    %361 = vmatprep.subr.mxu0 0.0
    %362 = vmatpush2.msra.mxu0 0.0
    %363 = vmatprep.subr.mxu0 0.0
    %364 = vmatpush2.msra.mxu0 0.0
    %365 = vmatprep.subr.mxu0 0.0
    %366 = vmatpush2.msra.mxu0 0.0
    %367 = vmatprep.subr.mxu0 0.0
    %368 = vmatpush2.msra.mxu0 0.0
    %369 = vmatprep.subr.mxu0 0.0
    %370 = vmatpush2.msra.mxu0 0.0
    %371 = vmatprep.subr.mxu0 0.0
    %372 = vmatpush2.msra.mxu0 0.0
    %373 = vmatprep.subr.mxu0 0.0
    %374 = vmatpush2.msra.mxu0 0.0
    %375 = vmatprep.subr.mxu0 0.0
    %376 = vmatpush2.msra.mxu0 0.0
    %377 = vmatprep.subr.mxu0 0.0
    %378 = vmatpush2.msra.mxu0 0.0
    %379 = vmatprep.subr.mxu0 0.0
    %380 = vmatpush2.msra.mxu0 0.0
    %381 = vmatprep.mubr.f32.mxu0 0.0
    %382 = vmatmul.mubr.f32.gmra.mxu0 %v315
    %v383 = vpop.f32.mrf.mxu0
    %v384 = vadd.f32 %v312, %v383
    %v385 = vpop.f32.mrf.mxu0
    %386 = vdwg.mxu0
    %v387 = vxor.u32 %v384, 2147483648
    %v388 = vmul.f32 %v387, 1.442695
    %v389 = vpow.pop %v388
    %v390 = vadd.f32 %v389, 1.0
    %v391 = vrcp.pop %v390
    %v392 = vmul.f32 1.0, %v391
    %v393 = vtanh.pop %v384
    %395 = vrot.lane.b32.xlu0 %v302, 32
    %v396 = vpop.permute.xlu0 %395
    %v398 = vmul.f32 %v392, %v396
    %400 = vrot.lane.b32.xlu0 %v393, 64
    %v401 = vpop.permute.xlu0 %400
    %v403 = vmul.f32 %v392, %v401
    %405 = vrot.lane.b32.xlu0 %v403, 32
    %v406 = vpop.permute.xlu0 %405
    %v408 = vadd.f32 %v398, %v406
    %v409 = vtanh.pop %v408
    %411 = vrot.lane.b32.xlu0 %v409, 64
    %v412 = vpop.permute.xlu0 %411
    %v414 = vmul.f32 %v392, %v412
    %416 = vrot.lane.b32.xlu0 %v414, 32
    %v417 = vpop.permute.xlu0 %416
    %s419 = scalar_lea.vmem [#allocation4], 8
    %420 = vst.msk [vmem:[%s419] sm:$0xff] %vm170, %v417
    %422 = vrot.lane.b32.xlu0 %v408, 96
    %v423 = vpop.permute.xlu0 %422
    %s425 = scalar_lea.vmem [#allocation6], 8
    %426 = vst.msk [vmem:[%s425] sm:$0xff] %vm170, %v423
    %v427 = vld [vmem:[%s8] sm:$0xff]
    %v428 = vld [vmem:[%s8 + $0x8] sm:$0xff]
    %v429 = vld [vmem:[%s8 + $0x10] sm:$0xff]
    %v430 = vld [vmem:[%s8 + $0x18] sm:$0xff]
    %v431 = vld [vmem:[%s8 + $0x20] sm:$0xff]
    %v432 = vld [vmem:[%s8 + $0x28] sm:$0xff]
    %v433 = vld [vmem:[%s8 + $0x30] sm:$0xff]
    %v434 = vld [vmem:[%s8 + $0x38] sm:$0xff]
    %v435 = vld [vmem:[%s9] sm:$0x3]
    %v437 = vlaneseq
    %v438 = vshrl.u32 %v437, 7
    %v439 = vsub.s32 0, %v438
    %v440 = vrot.slane %v435, %v439
    %v441 = vlaneseq
    %v442 = vshrl.u32 %v441, 7
    %v443 = vsub.s32 1, %v442
    %v444 = vrot.slane %v435, %v443
    %v447 = vsel %vm170, %v417, 0
    %449 = vmatprep.subr.mxu0 0.0
    %450 = vmatpush1.msra.mxu0 0.0
    %451 = vmatprep.subr.mxu0 0.0
    %452 = vmatpush1.msra.mxu0 0.0
    %453 = vmatprep.subr.mxu0 0.0
    %454 = vmatpush1.msra.mxu0 0.0
    %455 = vmatprep.subr.mxu0 0.0
    %456 = vmatpush1.msra.mxu0 0.0
    %457 = vmatprep.subr.mxu0 0.0
    %458 = vmatpush1.msra.mxu0 0.0
    %459 = vmatprep.subr.mxu0 0.0
    %460 = vmatpush1.msra.mxu0 0.0
    %461 = vmatprep.subr.mxu0 0.0
    %462 = vmatpush1.msra.mxu0 0.0
    %463 = vmatprep.subr.mxu0 0.0
    %464 = vmatpush1.msra.mxu0 0.0
    %465 = vmatprep.subr.mxu0 0.0
    %466 = vmatpush1.msra.mxu0 0.0
    %467 = vmatprep.subr.mxu0 0.0
    %468 = vmatpush1.msra.mxu0 0.0
    %469 = vmatprep.subr.mxu0 0.0
    %470 = vmatpush1.msra.mxu0 0.0
    %471 = vmatprep.subr.mxu0 0.0
    %472 = vmatpush1.msra.mxu0 0.0
    %473 = vmatprep.subr.mxu0 %v434
    %474 = vmatpush1.msra.mxu0 %v433
    %475 = vmatprep.subr.mxu0 %v432
    %476 = vmatpush1.msra.mxu0 %v431
    %477 = vmatprep.subr.mxu0 %v430
    %478 = vmatpush1.msra.mxu0 %v429
    %479 = vmatprep.subr.mxu0 %v428
    %480 = vmatpush1.msra.mxu0 %v427
    %481 = vmatprep.subr.mxu0 0.0
    %482 = vmatpush2.msra.mxu0 0.0
    %483 = vmatprep.subr.mxu0 0.0
    %484 = vmatpush2.msra.mxu0 0.0
    %485 = vmatprep.subr.mxu0 0.0
    %486 = vmatpush2.msra.mxu0 0.0
    %487 = vmatprep.subr.mxu0 0.0
    %488 = vmatpush2.msra.mxu0 0.0
    %489 = vmatprep.subr.mxu0 0.0
    %490 = vmatpush2.msra.mxu0 0.0
    %491 = vmatprep.subr.mxu0 0.0
    %492 = vmatpush2.msra.mxu0 0.0
    %493 = vmatprep.subr.mxu0 0.0
    %494 = vmatpush2.msra.mxu0 0.0
    %495 = vmatprep.subr.mxu0 0.0
    %496 = vmatpush2.msra.mxu0 0.0
    %497 = vmatprep.subr.mxu0 0.0
    %498 = vmatpush2.msra.mxu0 0.0
    %499 = vmatprep.subr.mxu0 0.0
    %500 = vmatpush2.msra.mxu0 0.0
    %501 = vmatprep.subr.mxu0 0.0
    %502 = vmatpush2.msra.mxu0 0.0
    %503 = vmatprep.subr.mxu0 0.0
    %504 = vmatpush2.msra.mxu0 0.0
    %505 = vmatprep.subr.mxu0 0.0
    %506 = vmatpush2.msra.mxu0 0.0
    %507 = vmatprep.subr.mxu0 0.0
    %508 = vmatpush2.msra.mxu0 0.0
    %509 = vmatprep.subr.mxu0 0.0
    %510 = vmatpush2.msra.mxu0 0.0
    %511 = vmatprep.subr.mxu0 0.0
    %512 = vmatpush2.msra.mxu0 0.0
    %513 = vmatprep.mubr.f32.mxu0 0.0
    %514 = vmatmul.mubr.f32.gmra.mxu0 %v447
    %v515 = vpop.f32.mrf.mxu0
    %v516 = vadd.f32 %v440, %v515
    %v517 = vpop.f32.mrf.mxu0
    %v518 = vadd.f32 %v444, %v517
    %519 = vdwg.mxu0
    %520 = vst [vmem:[#allocation2] sm:$0xff] %v516
    %521 = vst [vmem:[#allocation2 + $0x8] sm:$0xff] %v518
    // Predicated region
    $region42: #{forward.1} parent=1 // pred_check
      _
    $region43: #{forward.1} parent=1 // pred_check_branch
      %523 = sbr.rel (0) target = $region45
    $region44: #{forward.1} parent=1 // pred_region
      %s525 = ssub.s32 256, 256
      %526 = vsyncadd [#allocation3], %s525
      %s528 = sshll.u32 [#allocation2], 4
      %s529 = int_to_ptr.vmem [resolvable:$true] %s528
      %531 = dma.vmem_to_hbm [thread:$0]  %s529, 256, %s10, [#allocation3]
    $region45: #{forward.1} parent=1 // pred_fallthru
      _
    // Predicated region
    $region46: #{forward.1} parent=1 // pred_check
      _
    $region47: #{forward.1} parent=1 // pred_check_branch
      %533 = sbr.rel (0) target = $region49
    $region48: #{forward.1} parent=1 // pred_region
      %s535 = ssub.s32 256, 256
      %536 = vsyncadd [#allocation5], %s535
      %s537 = sshll.u32 [#allocation4], 4
      %s538 = int_to_ptr.vmem [resolvable:$true] %s537
      %543 = dma.vmem_to_hbm [thread:$0]  %s538, 256, %s11, [#allocation5], 128, 128, 8
    $region49: #{forward.1} parent=1 // pred_fallthru
      _
    // Predicated region
    $region50: #{forward.1} parent=1 // pred_check
      _
    $region51: #{forward.1} parent=1 // pred_check_branch
      %545 = sbr.rel (0) target = $region53
    $region52: #{forward.1} parent=1 // pred_region
      %s547 = ssub.s32 256, 256
      %548 = vsyncadd [#allocation5], %s547
      %s549 = sshll.u32 [#allocation6], 4
      %s550 = int_to_ptr.vmem [resolvable:$true] %s549
      %555 = dma.vmem_to_hbm [thread:$0]  %s550, 256, %s12, [#allocation5], 128, 128, 8
    $region53: #{forward.1} parent=1 // pred_fallthru
      _
    // Predicated region
    $region54: #{forward.1} parent=1 // pred_check
      _
    $region55: #{forward.1} parent=1 // pred_check_branch
      %557 = sbr.rel (0) target = $region57
    $region56: #{forward.1} parent=1 // pred_region
      %558 = dma.done [#allocation3], 256
    $region57: #{forward.1} parent=1 // pred_fallthru
      _
    // Predicated region
    $region58: #{forward.1} parent=1 // pred_check
      _
    $region59: #{forward.1} parent=1 // pred_check_branch
      %560 = sbr.rel (0) target = $region61
    $region60: #{forward.1} parent=1 // pred_region
      %561 = dma.done [#allocation5], 256
    $region61: #{forward.1} parent=1 // pred_fallthru
      _
    // Predicated region
    $region62: #{forward.1} parent=1 // pred_check
      _
    $region63: #{forward.1} parent=1 // pred_check_branch
      %563 = sbr.rel (0) target = $region65
    $region64: #{forward.1} parent=1 // pred_region
      %564 = dma.done [#allocation5], 256
    $region65: #{forward.1} parent=1 // pred_fallthru
      _
    %565 = vsyncpa [#allocation3], 1
    %566 = vsyncpa [#allocation5], 1

</llo_original>
